<compile_context>
chip_gen: v7x
topology: tpu7x:2x2x1
jax: 0.10.0
libtpu: 0.0.40
codegen_flags: <defaults>
</compile_context>

<pallas_src>
import functools

import jax
import jax.numpy as jnp
from jax.experimental import pallas as pl
from jax.experimental.pallas import tpu as pltpu

LANE = 128        # lane width (last dim)
BATCH_ALIGN = 16  # batch-tile alignment: bf16 sublane pack (16) ⊇ f32 sublane (8)


def _round_up(x, m):
    return (x + m - 1) // m * m


def _cdiv(a, b):
    return -(-a // b)


@functools.lru_cache(maxsize=1)
def _chip_info():
    """Returns (bf16_vpu, min_grid_steps, vmem_capacity_bytes) for local TPU."""
    kind = ""
    try:
        kind = jax.devices()[0].device_kind.lower()
    except Exception:
        pass
    is_v7 = any(t in kind for t in ("v7", "tpu7", "7x"))
    is_v6 = any(t in kind for t in ("v6", "trillium"))
    is_v5 = "v5" in kind
    bf16_vpu = is_v6 or is_v7            # v5e and older: no bf16 VPU/EUP
    min_grid_steps = 2 if is_v7 else 1   # v7x: 2 TensorCores per chip
    try:
        vmem_cap = int(pltpu.get_tpu_info().vmem_capacity_bytes)
    except Exception:
        if is_v7:
            vmem_cap = 64 << 20
        elif is_v5 or is_v6:
            vmem_cap = 128 << 20
        else:
            vmem_cap = 32 << 20          # conservative default for unknown gens
    return bf16_vpu, min_grid_steps, vmem_cap


def prepare_params(params, *, bf16_epilogue):
    """Pad + cast the weights ONCE, outside the per-call forward.

    Weights -> bf16 [in_p, out_p] (lane-dense, zero padded); hidden-layer
    biases in the epilogue dtype (bf16 on v6e/v7x, f32 on v5e); the final
    bias stays f32.  Returns a dict consumed by mlp_forward.
    """
    act_dtype = jnp.bfloat16 if bf16_epilogue else jnp.float32
    n_layers = len(params)
    flat, dims = [], []
    for li, (w, b) in enumerate(params):
        k, n = w.shape
        k_p, n_p = _round_up(k, LANE), _round_up(n, LANE)
        w_p = jnp.zeros((k_p, n_p), jnp.bfloat16).at[:k, :n].set(
            w.astype(jnp.bfloat16))
        b_dtype = act_dtype if li < n_layers - 1 else jnp.float32
        b_p = jnp.zeros((1, n_p), b_dtype).at[:, :n].set(
            b.reshape(1, -1).astype(b_dtype))
        flat.extend([w_p, b_p])
        dims.append((k, n, k_p, n_p))
    # TODO(synk): optional fp8 weight storage on v7x (bf16 activations, f32
    # accumulation) would halve resident weight VMEM and double MXU throughput.
    return {"flat": tuple(flat), "dims": tuple(dims),
            "bf16_epilogue": bool(bf16_epilogue)}


def _make_kernel(n_layers, bf16_epilogue):
    act_dtype = jnp.bfloat16 if bf16_epilogue else jnp.float32

    def kernel(x_ref, *refs):
        """Fused forward for one batch tile: (Linear -> ReLU) x5 -> Linear.

        MXU matmuls in bf16 with f32 accumulation; bias-add / ReLU in the
        epilogue dtype (bf16 on v6e/v7x, f32 on v5e); final layer in f32.
        """
        o_ref = refs[-1]
        wb = refs[:-1]
        h = x_ref[...]                                   # (TB, in_p) bf16
        for li in range(n_layers):
            w_ref, b_ref = wb[2 * li], wb[2 * li + 1]
            y = jnp.dot(h.astype(jnp.bfloat16), w_ref[...],
                        preferred_element_type=jnp.float32)
            if li < n_layers - 1:
                y = y.astype(act_dtype) + b_ref[...]     # (1, n_p) broadcasts
                h = jnp.maximum(y, 0.0)
            else:
                o_ref[...] = (y + b_ref[...]).astype(o_ref.dtype)

    return kernel


@functools.partial(jax.jit, static_argnames=(
    "dims", "bf16_epilogue", "block_batch", "vmem_cap_bytes", "min_grid_steps"))
def _mlp_forward_impl(x, flat, *, dims, bf16_epilogue, block_batch,
                      vmem_cap_bytes, min_grid_steps):
    n_layers = len(dims)
    B, d_in = x.shape
    d_in_p = dims[0][2]
    d_out, out_p = dims[-1][1], dims[-1][3]
    act_bytes = 2 if bf16_epilogue else 4

    # ---- VMEM accounting ----------------------------------------------------
    # Resident weights/biases (constant index_map -> never re-DMA'd) are still
    # double-buffered by Pallas's default pipeliner, so count them twice.
    # TODO(synk): pipeline_mode=pl.Buffered(1) on the weight BlockSpecs would
    # reclaim the dead second copy of every resident weight.
    resident_bytes = 0
    for li, (k, n, k_p, n_p) in enumerate(dims):
        b_bytes = n_p * (act_bytes if li < n_layers - 1 else 4)
        resident_bytes += 2 * (k_p * n_p * 2 + b_bytes)

    def vmem_need(tb):
        # double-buffered x (bf16) and out (f32) tiles
        io = 2 * tb * d_in_p * 2 + 2 * tb * out_p * 4
        # largest set of live per-layer intermediates:
        #   layer input activation + f32 dot result + epilogue copy
        live = 0
        for li, (k, n, k_p, n_p) in enumerate(dims):
            in_b = 2 if li == 0 else act_bytes
            out_b = 4 + (act_bytes if li < n_layers - 1 else 4)
            live = max(live, tb * (k_p * in_b + n_p * out_b))
        return resident_bytes + io + live + (2 << 20)  # compiler scratch headroom

    budget = max(vmem_cap_bytes - (16 << 20), 16 << 20)

    # ---- batch-tile sizing: biggest tile that fits the generation's budget ---
    tb = _round_up(min(block_batch, _round_up(B, BATCH_ALIGN)), BATCH_ALIGN)
    while tb > BATCH_ALIGN and vmem_need(tb) > budget:
        tb = max(BATCH_ALIGN, _round_up(tb // 2, BATCH_ALIGN))
    if vmem_need(tb) > budget:
        # TODO(synk): feature-tiled / weight-streaming fallback (second grid
        # axis over output features or pltpu.emit_pipeline over weight slabs)
        # for hidden sizes whose resident bf16 weights exceed the VMEM budget.
        raise ValueError(
            f"Resident MLP weights ({resident_bytes / 2**20:.1f} MiB incl. "
            f"double-buffering) do not fit the VMEM budget "
            f"({budget / 2**20:.1f} MiB).")

    # v7x: guarantee >= 2 grid steps so both TensorCores get work.
    b_aligned = _round_up(B, BATCH_ALIGN)
    if min_grid_steps > 1 and b_aligned >= min_grid_steps * BATCH_ALIGN:
        tb = min(tb, _round_up(_cdiv(b_aligned, min_grid_steps), BATCH_ALIGN))

    b_p = _round_up(B, tb)
    grid = (b_p // tb,)

    # ---- pad x (bf16: halves the per-tile input DMA) --------------------------
    x_p = jnp.zeros((b_p, d_in_p), jnp.bfloat16).at[:B, :d_in].set(
        x.astype(jnp.bfloat16))

    # x / out tiles move with the grid; weights & biases are VMEM-resident.
    in_specs = [pl.BlockSpec((tb, d_in_p), lambda i: (i, 0))]
    for p in flat:
        in_specs.append(pl.BlockSpec(p.shape, lambda i: (0, 0)))
    out_specs = pl.BlockSpec((tb, out_p), lambda i: (i, 0))

    flops = sum(2 * b_p * k_p * n_p for (_, _, k_p, n_p) in dims)
    param_bytes = sum(int(p.size) * p.dtype.itemsize for p in flat)
    cost = pl.CostEstimate(
        flops=int(flops), transcendentals=0,
        bytes_accessed=int(b_p * d_in_p * 2 + param_bytes + b_p * out_p * 4))

    vmem_limit = int(min(vmem_cap_bytes - (8 << 20),
                         max(vmem_need(tb) + (8 << 20), 32 << 20)))

    out_full = pl.pallas_call(
        _make_kernel(n_layers, bf16_epilogue),
        out_shape=jax.ShapeDtypeStruct((b_p, out_p), jnp.float32),
        grid=grid,
        in_specs=in_specs,
        out_specs=out_specs,
        compiler_params=pltpu.CompilerParams(
            dimension_semantics=("parallel",),
            vmem_limit_bytes=vmem_limit),
        cost_estimate=cost,
    )(x_p, *flat)

    return out_full[:B, :d_out]


def mlp_forward(x, prepared, *, block_batch=512):
    """x: [B, input_size] f32.  prepared: output of prepare_params()."""
    _, min_grid_steps, vmem_cap = _chip_info()
    return _mlp_forward_impl(
        x, prepared["flat"],
        dims=prepared["dims"],
        bf16_epilogue=prepared["bf16_epilogue"],
        block_batch=int(block_batch),
        vmem_cap_bytes=int(vmem_cap),
        min_grid_steps=int(min_grid_steps))


def init_params(key, input_size, hidden_size, output_size):
    """PyTorch-style Linear init: U(-1/sqrt(in), 1/sqrt(in)); weights stored
    transposed as (in, out), biases as (1, out)."""
    dims = [(input_size, hidden_size),
            (hidden_size, hidden_size),
            (hidden_size, hidden_size),
            (hidden_size, hidden_size),
            (hidden_size, hidden_size),
            (hidden_size, output_size)]
    params = []
    for (d_in, d_out) in dims:
        key, kw, kb = jax.random.split(key, 3)
        bound = 1.0 / jnp.sqrt(jnp.float32(d_in))
        w = jax.random.uniform(kw, (d_in, d_out), jnp.float32, -bound, bound)
        b = jax.random.uniform(kb, (1, d_out), jnp.float32, -bound, bound)
        params.append((w, b))
    return params


def mlp_reference_f32(x, params):
    h = x
    for i, (w, b) in enumerate(params):
        h = h @ w + b
        if i < len(params) - 1:
            h = jnp.maximum(h, 0.0)
    return h


def mlp_reference_mixed(x, params, *, bf16_epilogue):
    """Mimics the kernel arithmetic: bf16 MXU inputs, f32 accumulation,
    epilogue (bias + ReLU) in bf16 on v6e/v7x else f32; final layer in f32."""
    act = jnp.bfloat16 if bf16_epilogue else jnp.float32
    h = x.astype(jnp.bfloat16)
    for i, (w, b) in enumerate(params):
        y = jnp.dot(h.astype(jnp.bfloat16), w.astype(jnp.bfloat16),
                    preferred_element_type=jnp.float32)
        if i < len(params) - 1:
            h = jnp.maximum(y.astype(act) + b.astype(act), 0.0)
        else:
            return y + b.astype(jnp.float32)


if __name__ == "__main__":
    input_size, hidden_size, output_size = 16, 32, 8
    batch = 4

    key = jax.random.PRNGKey(0)
    key, kx = jax.random.split(key)
    x = jax.random.normal(kx, (batch, input_size), jnp.float32)

    params = init_params(key, input_size, hidden_size, output_size)

    bf16_vpu, _, _ = _chip_info()
    prepared = prepare_params(params, bf16_epilogue=bf16_vpu)   # pad/cast once

    out = mlp_forward(x, prepared)
    out = jax.block_until_ready(out)
    assert out.shape == (batch, output_size)

    # Exact-arithmetic reference (same dtype path as the kernel).
    ref_mixed = mlp_reference_mixed(x, params, bf16_epilogue=bf16_vpu)
    assert jnp.allclose(out, ref_mixed, atol=2e-2, rtol=2e-2), \
        "mismatch vs mixed-precision JAX reference"

    # Loose sanity check vs pure-f32 reference (bf16 rounding tolerance).
    ref_f32 = mlp_reference_f32(x, params)
    assert jnp.allclose(out, ref_f32, atol=1e-1, rtol=1e-1), \
        "mismatch vs f32 JAX reference"

    print("KERNEL_OK")
</pallas_src>

<mosaic_0001>
module attributes {stable_mosaic.version = 11 : i64} {
  func.func @kernel(%arg0: i32, %arg1: memref<16x128xbf16, #tpu.memory_space<vmem>>, %arg2: memref<128x128xbf16, #tpu.memory_space<vmem>>, %arg3: memref<1x128xf32, #tpu.memory_space<vmem>>, %arg4: memref<128x128xbf16, #tpu.memory_space<vmem>>, %arg5: memref<1x128xf32, #tpu.memory_space<vmem>>, %arg6: memref<128x128xbf16, #tpu.memory_space<vmem>>, %arg7: memref<1x128xf32, #tpu.memory_space<vmem>>, %arg8: memref<128x128xbf16, #tpu.memory_space<vmem>>, %arg9: memref<1x128xf32, #tpu.memory_space<vmem>>, %arg10: memref<128x128xbf16, #tpu.memory_space<vmem>>, %arg11: memref<1x128xf32, #tpu.memory_space<vmem>>, %arg12: memref<128x128xbf16, #tpu.memory_space<vmem>>, %arg13: memref<1x128xf32, #tpu.memory_space<vmem>>, %arg14: memref<16x128xf32, #tpu.memory_space<vmem>>) attributes {dimension_semantics = [#tpu.dimension_semantics<parallel>], iteration_bounds = array<i64: 1>, scalar_prefetch = 0 : i64, scratch_operands = 0 : i64, tpu.core_type = #tpu.core_type<tc>, window_params = [{transform_indices = @transform_0, window_bounds = array<i64: 16, 128>}, {pipeline_mode = #tpu.pipeline_mode<synchronous>, transform_indices = @transform_1, window_bounds = array<i64: 128, 128>}, {pipeline_mode = #tpu.pipeline_mode<synchronous>, transform_indices = @transform_2, window_bounds = array<i64: 1, 128>}, {pipeline_mode = #tpu.pipeline_mode<synchronous>, transform_indices = @transform_3, window_bounds = array<i64: 128, 128>}, {pipeline_mode = #tpu.pipeline_mode<synchronous>, transform_indices = @transform_4, window_bounds = array<i64: 1, 128>}, {pipeline_mode = #tpu.pipeline_mode<synchronous>, transform_indices = @transform_5, window_bounds = array<i64: 128, 128>}, {pipeline_mode = #tpu.pipeline_mode<synchronous>, transform_indices = @transform_6, window_bounds = array<i64: 1, 128>}, {pipeline_mode = #tpu.pipeline_mode<synchronous>, transform_indices = @transform_7, window_bounds = array<i64: 128, 128>}, {pipeline_mode = #tpu.pipeline_mode<synchronous>, transform_indices = @transform_8, window_bounds = array<i64: 1, 128>}, {pipeline_mode = #tpu.pipeline_mode<synchronous>, transform_indices = @transform_9, window_bounds = array<i64: 128, 128>}, {pipeline_mode = #tpu.pipeline_mode<synchronous>, transform_indices = @transform_10, window_bounds = array<i64: 1, 128>}, {pipeline_mode = #tpu.pipeline_mode<synchronous>, transform_indices = @transform_11, window_bounds = array<i64: 128, 128>}, {pipeline_mode = #tpu.pipeline_mode<synchronous>, transform_indices = @transform_12, window_bounds = array<i64: 1, 128>}, {transform_indices = @transform_13, window_bounds = array<i64: 16, 128>}]} {
    %c0 = arith.constant 0 : index
    %c0_0 = arith.constant 0 : index
    %0 = vector.load %arg1[%c0, %c0_0] : memref<16x128xbf16, #tpu.memory_space<vmem>>, vector<16x128xbf16>
    %c0_1 = arith.constant 0 : index
    %c0_2 = arith.constant 0 : index
    %1 = vector.load %arg2[%c0_1, %c0_2] : memref<128x128xbf16, #tpu.memory_space<vmem>>, vector<128x128xbf16>
    %cst = arith.constant dense<0.000000e+00> : vector<16x128xf32>
    %2 = tpu.matmul %0, %1, %cst {dimension_numbers = #tpu.dot_dimension_numbers<[1], [0], [0], [1], [0, 0, 1, 1], [], []>} : vector<16x128xbf16>, vector<128x128xbf16>, vector<16x128xf32> -> vector<16x128xf32>
    %c0_3 = arith.constant 0 : index
    %c0_4 = arith.constant 0 : index
    %3 = vector.load %arg3[%c0_3, %c0_4] : memref<1x128xf32, #tpu.memory_space<vmem>>, vector<1x128xf32>
    %4 = vector.broadcast %3 : vector<1x128xf32> to vector<16x128xf32>
    %5 = arith.addf %2, %4 : vector<16x128xf32>
    %cst_5 = arith.constant 0.000000e+00 : f32
    %6 = vector.broadcast %cst_5 : f32 to vector<16x128xf32>
    %7 = arith.maximumf %5, %6 : vector<16x128xf32>
    %8 = arith.truncf %7 : vector<16x128xf32> to vector<16x128xbf16>
    %c0_6 = arith.constant 0 : index
    %c0_7 = arith.constant 0 : index
    %9 = vector.load %arg4[%c0_6, %c0_7] : memref<128x128xbf16, #tpu.memory_space<vmem>>, vector<128x128xbf16>
    %cst_8 = arith.constant dense<0.000000e+00> : vector<16x128xf32>
    %10 = tpu.matmul %8, %9, %cst_8 {dimension_numbers = #tpu.dot_dimension_numbers<[1], [0], [0], [1], [0, 0, 1, 1], [], []>} : vector<16x128xbf16>, vector<128x128xbf16>, vector<16x128xf32> -> vector<16x128xf32>
    %c0_9 = arith.constant 0 : index
    %c0_10 = arith.constant 0 : index
    %11 = vector.load %arg5[%c0_9, %c0_10] : memref<1x128xf32, #tpu.memory_space<vmem>>, vector<1x128xf32>
    %12 = vector.broadcast %11 : vector<1x128xf32> to vector<16x128xf32>
    %13 = arith.addf %10, %12 : vector<16x128xf32>
    %cst_11 = arith.constant 0.000000e+00 : f32
    %14 = vector.broadcast %cst_11 : f32 to vector<16x128xf32>
    %15 = arith.maximumf %13, %14 : vector<16x128xf32>
    %16 = arith.truncf %15 : vector<16x128xf32> to vector<16x128xbf16>
    %c0_12 = arith.constant 0 : index
    %c0_13 = arith.constant 0 : index
    %17 = vector.load %arg6[%c0_12, %c0_13] : memref<128x128xbf16, #tpu.memory_space<vmem>>, vector<128x128xbf16>
    %cst_14 = arith.constant dense<0.000000e+00> : vector<16x128xf32>
    %18 = tpu.matmul %16, %17, %cst_14 {dimension_numbers = #tpu.dot_dimension_numbers<[1], [0], [0], [1], [0, 0, 1, 1], [], []>} : vector<16x128xbf16>, vector<128x128xbf16>, vector<16x128xf32> -> vector<16x128xf32>
    %c0_15 = arith.constant 0 : index
    %c0_16 = arith.constant 0 : index
    %19 = vector.load %arg7[%c0_15, %c0_16] : memref<1x128xf32, #tpu.memory_space<vmem>>, vector<1x128xf32>
    %20 = vector.broadcast %19 : vector<1x128xf32> to vector<16x128xf32>
    %21 = arith.addf %18, %20 : vector<16x128xf32>
    %cst_17 = arith.constant 0.000000e+00 : f32
    %22 = vector.broadcast %cst_17 : f32 to vector<16x128xf32>
    %23 = arith.maximumf %21, %22 : vector<16x128xf32>
    %24 = arith.truncf %23 : vector<16x128xf32> to vector<16x128xbf16>
    %c0_18 = arith.constant 0 : index
    %c0_19 = arith.constant 0 : index
    %25 = vector.load %arg8[%c0_18, %c0_19] : memref<128x128xbf16, #tpu.memory_space<vmem>>, vector<128x128xbf16>
    %cst_20 = arith.constant dense<0.000000e+00> : vector<16x128xf32>
    %26 = tpu.matmul %24, %25, %cst_20 {dimension_numbers = #tpu.dot_dimension_numbers<[1], [0], [0], [1], [0, 0, 1, 1], [], []>} : vector<16x128xbf16>, vector<128x128xbf16>, vector<16x128xf32> -> vector<16x128xf32>
    %c0_21 = arith.constant 0 : index
    %c0_22 = arith.constant 0 : index
    %27 = vector.load %arg9[%c0_21, %c0_22] : memref<1x128xf32, #tpu.memory_space<vmem>>, vector<1x128xf32>
    %28 = vector.broadcast %27 : vector<1x128xf32> to vector<16x128xf32>
    %29 = arith.addf %26, %28 : vector<16x128xf32>
    %cst_23 = arith.constant 0.000000e+00 : f32
    %30 = vector.broadcast %cst_23 : f32 to vector<16x128xf32>
    %31 = arith.maximumf %29, %30 : vector<16x128xf32>
    %32 = arith.truncf %31 : vector<16x128xf32> to vector<16x128xbf16>
    %c0_24 = arith.constant 0 : index
    %c0_25 = arith.constant 0 : index
    %33 = vector.load %arg10[%c0_24, %c0_25] : memref<128x128xbf16, #tpu.memory_space<vmem>>, vector<128x128xbf16>
    %cst_26 = arith.constant dense<0.000000e+00> : vector<16x128xf32>
    %34 = tpu.matmul %32, %33, %cst_26 {dimension_numbers = #tpu.dot_dimension_numbers<[1], [0], [0], [1], [0, 0, 1, 1], [], []>} : vector<16x128xbf16>, vector<128x128xbf16>, vector<16x128xf32> -> vector<16x128xf32>
    %c0_27 = arith.constant 0 : index
    %c0_28 = arith.constant 0 : index
    %35 = vector.load %arg11[%c0_27, %c0_28] : memref<1x128xf32, #tpu.memory_space<vmem>>, vector<1x128xf32>
    %36 = vector.broadcast %35 : vector<1x128xf32> to vector<16x128xf32>
    %37 = arith.addf %34, %36 : vector<16x128xf32>
    %cst_29 = arith.constant 0.000000e+00 : f32
    %38 = vector.broadcast %cst_29 : f32 to vector<16x128xf32>
    %39 = arith.maximumf %37, %38 : vector<16x128xf32>
    %40 = arith.truncf %39 : vector<16x128xf32> to vector<16x128xbf16>
    %c0_30 = arith.constant 0 : index
    %c0_31 = arith.constant 0 : index
    %41 = vector.load %arg12[%c0_30, %c0_31] : memref<128x128xbf16, #tpu.memory_space<vmem>>, vector<128x128xbf16>
    %cst_32 = arith.constant dense<0.000000e+00> : vector<16x128xf32>
    %42 = tpu.matmul %40, %41, %cst_32 {dimension_numbers = #tpu.dot_dimension_numbers<[1], [0], [0], [1], [0, 0, 1, 1], [], []>} : vector<16x128xbf16>, vector<128x128xbf16>, vector<16x128xf32> -> vector<16x128xf32>
    %c0_33 = arith.constant 0 : index
    %c0_34 = arith.constant 0 : index
    %43 = vector.load %arg13[%c0_33, %c0_34] : memref<1x128xf32, #tpu.memory_space<vmem>>, vector<1x128xf32>
    %44 = vector.broadcast %43 : vector<1x128xf32> to vector<16x128xf32>
    %45 = arith.addf %42, %44 : vector<16x128xf32>
    %c0_35 = arith.constant 0 : index
    %c0_36 = arith.constant 0 : index
    %46 = vector.load %arg14[%c0_35, %c0_36] : memref<16x128xf32, #tpu.memory_space<vmem>>, vector<16x128xf32>
    tpu.vector_store %arg14[%c0_35, %c0_36], %45 {strides = array<i32>} : memref<16x128xf32, #tpu.memory_space<vmem>>, vector<16x128xf32>,
    return
  }
  func.func @transform_0(%arg0: i32) -> (i32, i32) {
    %c0_i32 = arith.constant 0 : i32
    %c0_i32_0 = arith.constant 0 : i32
    return %arg0, %c0_i32 : i32, i32
  }
  func.func @transform_1(%arg0: i32) -> (i32, i32) {
    %c0_i32 = arith.constant 0 : i32
    %c0_i32_0 = arith.constant 0 : i32
    %c0_i32_1 = arith.constant 0 : i32
    return %c0_i32, %c0_i32_0 : i32, i32
  }
  func.func @transform_2(%arg0: i32) -> (i32, i32) {
    %c0_i32 = arith.constant 0 : i32
    %c0_i32_0 = arith.constant 0 : i32
    %c0_i32_1 = arith.constant 0 : i32
    return %c0_i32, %c0_i32_0 : i32, i32
  }
  func.func @transform_3(%arg0: i32) -> (i32, i32) {
    %c0_i32 = arith.constant 0 : i32
    %c0_i32_0 = arith.constant 0 : i32
    %c0_i32_1 = arith.constant 0 : i32
    return %c0_i32, %c0_i32_0 : i32, i32
  }
  func.func @transform_4(%arg0: i32) -> (i32, i32) {
    %c0_i32 = arith.constant 0 : i32
    %c0_i32_0 = arith.constant 0 : i32
    %c0_i32_1 = arith.constant 0 : i32
    return %c0_i32, %c0_i32_0 : i32, i32
  }
  func.func @transform_5(%arg0: i32) -> (i32, i32) {
    %c0_i32 = arith.constant 0 : i32
    %c0_i32_0 = arith.constant 0 : i32
    %c0_i32_1 = arith.constant 0 : i32
    return %c0_i32, %c0_i32_0 : i32, i32
  }
  func.func @transform_6(%arg0: i32) -> (i32, i32) {
    %c0_i32 = arith.constant 0 : i32
    %c0_i32_0 = arith.constant 0 : i32
    %c0_i32_1 = arith.constant 0 : i32
    return %c0_i32, %c0_i32_0 : i32, i32
  }
  func.func @transform_7(%arg0: i32) -> (i32, i32) {
    %c0_i32 = arith.constant 0 : i32
    %c0_i32_0 = arith.constant 0 : i32
    %c0_i32_1 = arith.constant 0 : i32
    return %c0_i32, %c0_i32_0 : i32, i32
  }
  func.func @transform_8(%arg0: i32) -> (i32, i32) {
    %c0_i32 = arith.constant 0 : i32
    %c0_i32_0 = arith.constant 0 : i32
    %c0_i32_1 = arith.constant 0 : i32
    return %c0_i32, %c0_i32_0 : i32, i32
  }
  func.func @transform_9(%arg0: i32) -> (i32, i32) {
    %c0_i32 = arith.constant 0 : i32
    %c0_i32_0 = arith.constant 0 : i32
    %c0_i32_1 = arith.constant 0 : i32
    return %c0_i32, %c0_i32_0 : i32, i32
  }
  func.func @transform_10(%arg0: i32) -> (i32, i32) {
    %c0_i32 = arith.constant 0 : i32
    %c0_i32_0 = arith.constant 0 : i32
    %c0_i32_1 = arith.constant 0 : i32
    return %c0_i32, %c0_i32_0 : i32, i32
  }
  func.func @transform_11(%arg0: i32) -> (i32, i32) {
    %c0_i32 = arith.constant 0 : i32
    %c0_i32_0 = arith.constant 0 : i32
    %c0_i32_1 = arith.constant 0 : i32
    return %c0_i32, %c0_i32_0 : i32, i32
  }
  func.func @transform_12(%arg0: i32) -> (i32, i32) {
    %c0_i32 = arith.constant 0 : i32
    %c0_i32_0 = arith.constant 0 : i32
    %c0_i32_1 = arith.constant 0 : i32
    return %c0_i32, %c0_i32_0 : i32, i32
  }
  func.func @transform_13(%arg0: i32) -> (i32, i32) {
    %c0_i32 = arith.constant 0 : i32
    %c0_i32_0 = arith.constant 0 : i32
    return %arg0, %c0_i32 : i32, i32
  }
}

</mosaic_0001>

<llo_original>
// kernel: _mlp_forward_impl.1
$region0: #{_mlp_forward_impl.1}
  #allocation0 [shape = 'u32[]', space=smem, size = 0x4, offset = 0x4, fixed_abs, tag = 'smem constant byte address 0x4 - core index']
  #allocation1 [shape = 'u32[144,128]{1,0:T(1,128)}', space=vmem, size = 0x12000, scoped, tag = 'internal scratch']
  %s0 = inlined_call_operand.vmem [shape: bf16[16,128], index: 0, kind: input, shape index: {}]
  %s1 = inlined_call_operand.hbm [shape: bf16[128,128], index: 1, kind: input, shape index: {}]
  %s2 = inlined_call_operand.vmem [shape: f32[1,128], index: 2, kind: input, shape index: {}]
  %s3 = inlined_call_operand.hbm [shape: bf16[128,128], index: 3, kind: input, shape index: {}]
  %s4 = inlined_call_operand.vmem [shape: f32[1,128], index: 4, kind: input, shape index: {}]
  %s5 = inlined_call_operand.hbm [shape: bf16[128,128], index: 5, kind: input, shape index: {}]
  %s6 = inlined_call_operand.vmem [shape: f32[1,128], index: 6, kind: input, shape index: {}]
  %s7 = inlined_call_operand.hbm [shape: bf16[128,128], index: 7, kind: input, shape index: {}]
  %s8 = inlined_call_operand.vmem [shape: f32[1,128], index: 8, kind: input, shape index: {}]
  %s9 = inlined_call_operand.hbm [shape: bf16[128,128], index: 9, kind: input, shape index: {}]
  %s10 = inlined_call_operand.vmem [shape: f32[1,128], index: 10, kind: input, shape index: {}]
  %s11 = inlined_call_operand.hbm [shape: bf16[128,128], index: 11, kind: input, shape index: {}]
  %s12 = inlined_call_operand.vmem [shape: f32[1,128], index: 12, kind: input, shape index: {}]
  %s13 = inlined_call_operand.vmem [shape: f32[16,128], index: 13, kind: output, shape index: {}]
  %s14 = sld [smem:[#allocation0]]
  $region86: #{_mlp_forward_impl.1} parent=0
    _
  %s16 = ssub.s32 1, %s14
  %s17 = scalar_select 0, %s16, %s14
  $region1: #{_mlp_forward_impl.1} parent=0
    #allocation2 [shape = 'u8[32768]{0}', space=vmem, size = 0x8000, scoped, tag = 'input window, operand 1, single buffered']
    #allocation3 [shape = 's32[1]{0}', space=sflag, size = 0x4, scoped, tag = 'scoped memory for _mlp_forward_impl.1']
    #allocation4 [shape = 'u8[32768]{0}', space=vmem, size = 0x8000, scoped, tag = 'input window, operand 3, single buffered']
    #allocation5 [shape = 's32[1]{0}', space=sflag, size = 0x4, scoped, tag = 'scoped memory for _mlp_forward_impl.1']
    #allocation6 [shape = 'u8[32768]{0}', space=vmem, size = 0x8000, scoped, tag = 'input window, operand 5, single buffered']
    #allocation7 [shape = 'u8[32768]{0}', space=vmem, size = 0x8000, scoped, tag = 'input window, operand 7, single buffered']
    #allocation8 [shape = 's32[1]{0}', space=sflag, size = 0x4, scoped, tag = 'scoped memory for _mlp_forward_impl.1']
    #allocation9 [shape = 'u8[32768]{0}', space=vmem, size = 0x8000, scoped, tag = 'input window, operand 9, single buffered']
    #allocation10 [shape = 'u8[32768]{0}', space=vmem, size = 0x8000, scoped, tag = 'input window, operand 11, single buffered']
    #allocation11 [shape = 's32[1]{0}', space=sflag, size = 0x4, scoped, tag = 'scoped memory for _mlp_forward_impl.1']
    %18 = vsyncpa [#allocation3], 0
    %19 = vsyncpa [#allocation5], 0
    %20 = vsyncpa [#allocation8], 0
    %21 = vsyncpa [#allocation11], 0
    // Predicated region
    $region2: #{_mlp_forward_impl.1} parent=1 // pred_check
      _
    $region3: #{_mlp_forward_impl.1} parent=1 // pred_check_branch
      %23 = sbr.rel (0) target = $region5
    $region4: #{_mlp_forward_impl.1} parent=1 // pred_region
      _
    $region5: #{_mlp_forward_impl.1} parent=1 // pred_fallthru
      _
    // Predicated region
    $region6: #{_mlp_forward_impl.1} parent=1 // pred_check
      _
    $region7: #{_mlp_forward_impl.1} parent=1 // pred_check_branch
      %25 = sbr.rel (0) target = $region9
    $region8: #{_mlp_forward_impl.1} parent=1 // pred_region
      %s27 = ssub.s32 1024, 1024
      %28 = vsyncadd [#allocation3], %s27
      %s29 = sshll.u32 [#allocation2], 4
      %s30 = int_to_ptr.vmem [resolvable:$true] %s29
      %35 = dma.hbm_to_vmem [thread:$0]  %s1, 1024, %s30, [#allocation3], 64, 64, 4
    $region9: #{_mlp_forward_impl.1} parent=1 // pred_fallthru
      _
    // Predicated region
    $region10: #{_mlp_forward_impl.1} parent=1 // pred_check
      _
    $region11: #{_mlp_forward_impl.1} parent=1 // pred_check_branch
      %37 = sbr.rel (0) target = $region13
    $region12: #{_mlp_forward_impl.1} parent=1 // pred_region
      _
    $region13: #{_mlp_forward_impl.1} parent=1 // pred_fallthru
      _
    // Predicated region
    $region14: #{_mlp_forward_impl.1} parent=1 // pred_check
      _
    $region15: #{_mlp_forward_impl.1} parent=1 // pred_check_branch
      %39 = sbr.rel (0) target = $region17
    $region16: #{_mlp_forward_impl.1} parent=1 // pred_region
      %s41 = ssub.s32 1024, 1024
      %42 = vsyncadd [#allocation5], %s41
      %s43 = sshll.u32 [#allocation4], 4
      %s44 = int_to_ptr.vmem [resolvable:$true] %s43
      %49 = dma.hbm_to_vmem [thread:$0]  %s3, 1024, %s44, [#allocation5], 64, 64, 4
    $region17: #{_mlp_forward_impl.1} parent=1 // pred_fallthru
      _
    // Predicated region
    $region18: #{_mlp_forward_impl.1} parent=1 // pred_check
      _
    $region19: #{_mlp_forward_impl.1} parent=1 // pred_check_branch
      %51 = sbr.rel (0) target = $region21
    $region20: #{_mlp_forward_impl.1} parent=1 // pred_region
      _
    $region21: #{_mlp_forward_impl.1} parent=1 // pred_fallthru
      _
    // Predicated region
    $region22: #{_mlp_forward_impl.1} parent=1 // pred_check
      _
    $region23: #{_mlp_forward_impl.1} parent=1 // pred_check_branch
      %53 = sbr.rel (0) target = $region25
    $region24: #{_mlp_forward_impl.1} parent=1 // pred_region
      %s55 = ssub.s32 1024, 1024
      %56 = vsyncadd [#allocation5], %s55
      %s57 = sshll.u32 [#allocation6], 4
      %s58 = int_to_ptr.vmem [resolvable:$true] %s57
      %63 = dma.hbm_to_vmem [thread:$0]  %s5, 1024, %s58, [#allocation5], 64, 64, 4
    $region25: #{_mlp_forward_impl.1} parent=1 // pred_fallthru
      _
    // Predicated region
    $region26: #{_mlp_forward_impl.1} parent=1 // pred_check
      _
    $region27: #{_mlp_forward_impl.1} parent=1 // pred_check_branch
      %65 = sbr.rel (0) target = $region29
    $region28: #{_mlp_forward_impl.1} parent=1 // pred_region
      _
    $region29: #{_mlp_forward_impl.1} parent=1 // pred_fallthru
      _
    // Predicated region
    $region30: #{_mlp_forward_impl.1} parent=1 // pred_check
      _
    $region31: #{_mlp_forward_impl.1} parent=1 // pred_check_branch
      %67 = sbr.rel (0) target = $region33
    $region32: #{_mlp_forward_impl.1} parent=1 // pred_region
      %s69 = ssub.s32 1024, 1024
      %70 = vsyncadd [#allocation8], %s69
      %s71 = sshll.u32 [#allocation7], 4
      %s72 = int_to_ptr.vmem [resolvable:$true] %s71
      %77 = dma.hbm_to_vmem [thread:$0]  %s7, 1024, %s72, [#allocation8], 64, 64, 4
    $region33: #{_mlp_forward_impl.1} parent=1 // pred_fallthru
      _
    // Predicated region
    $region34: #{_mlp_forward_impl.1} parent=1 // pred_check
      _
    $region35: #{_mlp_forward_impl.1} parent=1 // pred_check_branch
      %79 = sbr.rel (0) target = $region37
    $region36: #{_mlp_forward_impl.1} parent=1 // pred_region
      _
    $region37: #{_mlp_forward_impl.1} parent=1 // pred_fallthru
      _
    // Predicated region
    $region38: #{_mlp_forward_impl.1} parent=1 // pred_check
      _
    $region39: #{_mlp_forward_impl.1} parent=1 // pred_check_branch
      %81 = sbr.rel (0) target = $region41
    $region40: #{_mlp_forward_impl.1} parent=1 // pred_region
      %s83 = ssub.s32 1024, 1024
      %84 = vsyncadd [#allocation8], %s83
      %s85 = sshll.u32 [#allocation9], 4
      %s86 = int_to_ptr.vmem [resolvable:$true] %s85
      %91 = dma.hbm_to_vmem [thread:$0]  %s9, 1024, %s86, [#allocation8], 64, 64, 4
    $region41: #{_mlp_forward_impl.1} parent=1 // pred_fallthru
      _
    // Predicated region
    $region42: #{_mlp_forward_impl.1} parent=1 // pred_check
      _
    $region43: #{_mlp_forward_impl.1} parent=1 // pred_check_branch
      %93 = sbr.rel (0) target = $region45
    $region44: #{_mlp_forward_impl.1} parent=1 // pred_region
      _
    $region45: #{_mlp_forward_impl.1} parent=1 // pred_fallthru
      _
    // Predicated region
    $region46: #{_mlp_forward_impl.1} parent=1 // pred_check
      _
    $region47: #{_mlp_forward_impl.1} parent=1 // pred_check_branch
      %95 = sbr.rel (0) target = $region49
    $region48: #{_mlp_forward_impl.1} parent=1 // pred_region
      %s97 = ssub.s32 1024, 1024
      %98 = vsyncadd [#allocation11], %s97
      %s99 = sshll.u32 [#allocation10], 4
      %s100 = int_to_ptr.vmem [resolvable:$true] %s99
      %105 = dma.hbm_to_vmem [thread:$0]  %s11, 1024, %s100, [#allocation11], 64, 64, 4
    $region49: #{_mlp_forward_impl.1} parent=1 // pred_fallthru
      _
    // Predicated region
    $region50: #{_mlp_forward_impl.1} parent=1 // pred_check
      _
    $region51: #{_mlp_forward_impl.1} parent=1 // pred_check_branch
      %107 = sbr.rel (0) target = $region53
    $region52: #{_mlp_forward_impl.1} parent=1 // pred_region
      _
    $region53: #{_mlp_forward_impl.1} parent=1 // pred_fallthru
      _
    // Predicated region
    $region54: #{_mlp_forward_impl.1} parent=1 // pred_check
      _
    $region55: #{_mlp_forward_impl.1} parent=1 // pred_check_branch
      %109 = sbr.rel (0) target = $region57
    $region56: #{_mlp_forward_impl.1} parent=1 // pred_region
      %110 = dma.done [#allocation3], 1024
    $region57: #{_mlp_forward_impl.1} parent=1 // pred_fallthru
      _
    // Predicated region
    $region58: #{_mlp_forward_impl.1} parent=1 // pred_check
      _
    $region59: #{_mlp_forward_impl.1} parent=1 // pred_check_branch
      %112 = sbr.rel (0) target = $region61
    $region60: #{_mlp_forward_impl.1} parent=1 // pred_region
      %113 = dma.done [#allocation5], 1024
    $region61: #{_mlp_forward_impl.1} parent=1 // pred_fallthru
      _
    // Predicated region
    $region62: #{_mlp_forward_impl.1} parent=1 // pred_check
      _
    $region63: #{_mlp_forward_impl.1} parent=1 // pred_check_branch
      %115 = sbr.rel (0) target = $region65
    $region64: #{_mlp_forward_impl.1} parent=1 // pred_region
      %116 = dma.done [#allocation5], 1024
    $region65: #{_mlp_forward_impl.1} parent=1 // pred_fallthru
      _
    // Predicated region
    $region66: #{_mlp_forward_impl.1} parent=1 // pred_check
      _
    $region67: #{_mlp_forward_impl.1} parent=1 // pred_check_branch
      %118 = sbr.rel (0) target = $region69
    $region68: #{_mlp_forward_impl.1} parent=1 // pred_region
      %119 = dma.done [#allocation8], 1024
    $region69: #{_mlp_forward_impl.1} parent=1 // pred_fallthru
      _
    // Predicated region
    $region70: #{_mlp_forward_impl.1} parent=1 // pred_check
      _
    $region71: #{_mlp_forward_impl.1} parent=1 // pred_check_branch
      %121 = sbr.rel (0) target = $region73
    $region72: #{_mlp_forward_impl.1} parent=1 // pred_region
      %122 = dma.done [#allocation8], 1024
    $region73: #{_mlp_forward_impl.1} parent=1 // pred_fallthru
      _
    // Predicated region
    $region74: #{_mlp_forward_impl.1} parent=1 // pred_check
      _
    $region75: #{_mlp_forward_impl.1} parent=1 // pred_check_branch
      %124 = sbr.rel (0) target = $region77
    $region76: #{_mlp_forward_impl.1} parent=1 // pred_region
      %125 = dma.done [#allocation11], 1024
    $region77: #{_mlp_forward_impl.1} parent=1 // pred_fallthru
      _
    %v127 = vld [vmem:[%s0] sm:$0xf]
    %v128 = vld [vmem:[%s0 + $0x4] sm:$0xf]
    %v129 = vld [vmem:[#allocation2] sm:$0xf]
    %v130 = vld [vmem:[#allocation2 + $0x4] sm:$0xf]
    %v131 = vld [vmem:[#allocation2 + $0x8] sm:$0xf]
    %v132 = vld [vmem:[#allocation2 + $0xc] sm:$0xf]
    %v133 = vld [vmem:[#allocation2 + $0x10] sm:$0xf]
    %v134 = vld [vmem:[#allocation2 + $0x14] sm:$0xf]
    %v135 = vld [vmem:[#allocation2 + $0x18] sm:$0xf]
    %v136 = vld [vmem:[#allocation2 + $0x1c] sm:$0xf]
    %v137 = vld [vmem:[#allocation2 + $0x20] sm:$0xf]
    %v138 = vld [vmem:[#allocation2 + $0x24] sm:$0xf]
    %v139 = vld [vmem:[#allocation2 + $0x28] sm:$0xf]
    %v140 = vld [vmem:[#allocation2 + $0x2c] sm:$0xf]
    %v141 = vld [vmem:[#allocation2 + $0x30] sm:$0xf]
    %v142 = vld [vmem:[#allocation2 + $0x34] sm:$0xf]
    %v143 = vld [vmem:[#allocation2 + $0x38] sm:$0xf]
    %v144 = vld [vmem:[#allocation2 + $0x3c] sm:$0xf]
    %v145 = vld [vmem:[%s2] sm:$0x1]
    %v147 = vlaneseq
    %v148 = vshrl.u32 %v147, 7
    %v149 = vsub.s32 0, %v148
    %v150 = vrot.slane %v145, %v149
    %v154 = vunpack.c.l.b16 %v127
    %v155 = vunpack.c.l.b16 %v128
    %v156 = vpack.c.b16 %v155, %v154
    %v174 = vunpack.c.l.b16 %v129
    %v175 = vunpack.c.l.b16 %v130
    %v176 = vunpack.c.l.b16 %v131
    %v177 = vunpack.c.l.b16 %v132
    %v178 = vunpack.c.l.b16 %v133
    %v179 = vunpack.c.l.b16 %v134
    %v180 = vunpack.c.l.b16 %v135
    %v181 = vunpack.c.l.b16 %v136
    %v182 = vunpack.c.l.b16 %v137
    %v183 = vunpack.c.l.b16 %v138
    %v184 = vunpack.c.l.b16 %v139
    %v185 = vunpack.c.l.b16 %v140
    %v186 = vunpack.c.l.b16 %v141
    %v187 = vunpack.c.l.b16 %v142
    %v188 = vunpack.c.l.b16 %v143
    %v189 = vunpack.c.l.b16 %v144
    %v190 = vpack.c.b16 %v175, %v174
    %v191 = vpack.c.b16 %v177, %v176
    %v192 = vpack.c.b16 %v179, %v178
    %v193 = vpack.c.b16 %v181, %v180
    %v194 = vpack.c.b16 %v183, %v182
    %v195 = vpack.c.b16 %v185, %v184
    %v196 = vpack.c.b16 %v187, %v186
    %v197 = vpack.c.b16 %v189, %v188
    %206 = vmatprep.subr.bf16.mxu0 0
    %207 = vmatpush1.bf16.msra.mxu0 %v190
    %208 = vmatprep.subr.bf16.mxu0 0
    %209 = vmatpush1.bf16.msra.mxu0 %v191
    %210 = vmatprep.subr.bf16.mxu0 0
    %211 = vmatpush1.bf16.msra.mxu0 %v192
    %212 = vmatprep.subr.bf16.mxu0 0
    %213 = vmatpush1.bf16.msra.mxu0 %v193
    %214 = vmatprep.subr.bf16.mxu0 0
    %215 = vmatpush1.bf16.msra.mxu0 %v194
    %216 = vmatprep.subr.bf16.mxu0 0
    %217 = vmatpush1.bf16.msra.mxu0 %v195
    %218 = vmatprep.subr.bf16.mxu0 0
    %219 = vmatpush1.bf16.msra.mxu0 %v196
    %220 = vmatprep.subr.bf16.mxu0 0
    %221 = vmatpush1.bf16.msra.mxu0 %v197
    %222 = vmatprep.subr.bf16.mxu0 0
    %223 = vmatpush1.bf16.msra.mxu0 0
    %224 = vmatprep.subr.bf16.mxu0 0
    %225 = vmatpush1.bf16.msra.mxu0 0
    %226 = vmatprep.subr.bf16.mxu0 0
    %227 = vmatpush1.bf16.msra.mxu0 0
    %228 = vmatprep.subr.bf16.mxu0 0
    %229 = vmatpush1.bf16.msra.mxu0 0
    %230 = vmatprep.subr.bf16.mxu0 0
    %231 = vmatpush1.bf16.msra.mxu0 0
    %232 = vmatprep.subr.bf16.mxu0 0
    %233 = vmatpush1.bf16.msra.mxu0 0
    %234 = vmatprep.subr.bf16.mxu0 0
    %235 = vmatpush1.bf16.msra.mxu0 0
    %236 = vmatprep.subr.bf16.mxu0 0
    %237 = vmatpush1.bf16.msra.mxu0 0
    %238 = vmatprep.mubr.bf16.mxu0 0
    %239 = vmatmul.mubr.bf16.gmra.mrb[0].mxu0 %v156
    %v240 = vpop.f32.mrb[0].mxu0
    %v241 = vadd.f32 %v150, %v240
    %v242 = vpop.f32.mrb[0].mxu0
    %v243 = vpop.f32.mrb[0].mxu0
    %v244 = vadd.f32 %v150, %v243
    %v245 = vpop.f32.mrb[0].mxu0
    %246 = vdwg.mxu0
    %v247 = vmax.f32 %v241, 0.0
    %v248 = vmax.f32 %v244, 0.0
    %v249 = vpack.c.bf16 %v248, %v247
    %v250 = vld [vmem:[#allocation4] sm:$0xf]
    %v251 = vld [vmem:[#allocation4 + $0x4] sm:$0xf]
    %v252 = vld [vmem:[#allocation4 + $0x8] sm:$0xf]
    %v253 = vld [vmem:[#allocation4 + $0xc] sm:$0xf]
    %v254 = vld [vmem:[#allocation4 + $0x10] sm:$0xf]
    %v255 = vld [vmem:[#allocation4 + $0x14] sm:$0xf]
    %v256 = vld [vmem:[#allocation4 + $0x18] sm:$0xf]
    %v257 = vld [vmem:[#allocation4 + $0x1c] sm:$0xf]
    %v258 = vld [vmem:[#allocation4 + $0x20] sm:$0xf]
    %v259 = vld [vmem:[#allocation4 + $0x24] sm:$0xf]
    %v260 = vld [vmem:[#allocation4 + $0x28] sm:$0xf]
    %v261 = vld [vmem:[#allocation4 + $0x2c] sm:$0xf]
    %v262 = vld [vmem:[#allocation4 + $0x30] sm:$0xf]
    %v263 = vld [vmem:[#allocation4 + $0x34] sm:$0xf]
    %v264 = vld [vmem:[#allocation4 + $0x38] sm:$0xf]
    %v265 = vld [vmem:[#allocation4 + $0x3c] sm:$0xf]
    %v266 = vld [vmem:[%s4] sm:$0x1]
    %v268 = vlaneseq
    %v269 = vshrl.u32 %v268, 7
    %v270 = vsub.s32 0, %v269
    %v271 = vrot.slane %v266, %v270
    %v289 = vunpack.c.l.b16 %v250
    %v290 = vunpack.c.l.b16 %v251
    %v291 = vunpack.c.l.b16 %v252
    %v292 = vunpack.c.l.b16 %v253
    %v293 = vunpack.c.l.b16 %v254
    %v294 = vunpack.c.l.b16 %v255
    %v295 = vunpack.c.l.b16 %v256
    %v296 = vunpack.c.l.b16 %v257
    %v297 = vunpack.c.l.b16 %v258
    %v298 = vunpack.c.l.b16 %v259
    %v299 = vunpack.c.l.b16 %v260
    %v300 = vunpack.c.l.b16 %v261
    %v301 = vunpack.c.l.b16 %v262
    %v302 = vunpack.c.l.b16 %v263
    %v303 = vunpack.c.l.b16 %v264
    %v304 = vunpack.c.l.b16 %v265
    %v305 = vpack.c.b16 %v290, %v289
    %v306 = vpack.c.b16 %v292, %v291
    %v307 = vpack.c.b16 %v294, %v293
    %v308 = vpack.c.b16 %v296, %v295
    %v309 = vpack.c.b16 %v298, %v297
    %v310 = vpack.c.b16 %v300, %v299
    %v311 = vpack.c.b16 %v302, %v301
    %v312 = vpack.c.b16 %v304, %v303
    %321 = vmatprep.subr.bf16.mxu0 0
    %322 = vmatpush1.bf16.msra.mxu0 %v305
    %323 = vmatprep.subr.bf16.mxu0 0
    %324 = vmatpush1.bf16.msra.mxu0 %v306
    %325 = vmatprep.subr.bf16.mxu0 0
    %326 = vmatpush1.bf16.msra.mxu0 %v307
    %327 = vmatprep.subr.bf16.mxu0 0
    %328 = vmatpush1.bf16.msra.mxu0 %v308
    %329 = vmatprep.subr.bf16.mxu0 0
    %330 = vmatpush1.bf16.msra.mxu0 %v309
    %331 = vmatprep.subr.bf16.mxu0 0
    %332 = vmatpush1.bf16.msra.mxu0 %v310
    %333 = vmatprep.subr.bf16.mxu0 0
    %334 = vmatpush1.bf16.msra.mxu0 %v311
    %335 = vmatprep.subr.bf16.mxu0 0
    %336 = vmatpush1.bf16.msra.mxu0 %v312
    %337 = vmatprep.subr.bf16.mxu0 0
    %338 = vmatpush1.bf16.msra.mxu0 0
    %339 = vmatprep.subr.bf16.mxu0 0
    %340 = vmatpush1.bf16.msra.mxu0 0
    %341 = vmatprep.subr.bf16.mxu0 0
    %342 = vmatpush1.bf16.msra.mxu0 0
    %343 = vmatprep.subr.bf16.mxu0 0
    %344 = vmatpush1.bf16.msra.mxu0 0
    %345 = vmatprep.subr.bf16.mxu0 0
    %346 = vmatpush1.bf16.msra.mxu0 0
    %347 = vmatprep.subr.bf16.mxu0 0
    %348 = vmatpush1.bf16.msra.mxu0 0
    %349 = vmatprep.subr.bf16.mxu0 0
    %350 = vmatpush1.bf16.msra.mxu0 0
    %351 = vmatprep.subr.bf16.mxu0 0
    %352 = vmatpush1.bf16.msra.mxu0 0
    %353 = vmatprep.mubr.bf16.mxu0 0
    %354 = vmatmul.mubr.bf16.gmra.mrb[0].mxu0 %v249
    %v355 = vpop.f32.mrb[0].mxu0
    %v356 = vadd.f32 %v271, %v355
    %v357 = vpop.f32.mrb[0].mxu0
    %v358 = vpop.f32.mrb[0].mxu0
    %v359 = vadd.f32 %v271, %v358
    %v360 = vpop.f32.mrb[0].mxu0
    %361 = vdwg.mxu0
    %v362 = vmax.f32 %v356, 0.0
    %v363 = vmax.f32 %v359, 0.0
    %v364 = vpack.c.bf16 %v363, %v362
    %v365 = vld [vmem:[#allocation6] sm:$0xf]
    %v366 = vld [vmem:[#allocation6 + $0x4] sm:$0xf]
    %v367 = vld [vmem:[#allocation6 + $0x8] sm:$0xf]
    %v368 = vld [vmem:[#allocation6 + $0xc] sm:$0xf]
    %v369 = vld [vmem:[#allocation6 + $0x10] sm:$0xf]
    %v370 = vld [vmem:[#allocation6 + $0x14] sm:$0xf]
    %v371 = vld [vmem:[#allocation6 + $0x18] sm:$0xf]
    %v372 = vld [vmem:[#allocation6 + $0x1c] sm:$0xf]
    %v373 = vld [vmem:[#allocation6 + $0x20] sm:$0xf]
    %v374 = vld [vmem:[#allocation6 + $0x24] sm:$0xf]
    %v375 = vld [vmem:[#allocation6 + $0x28] sm:$0xf]
    %v376 = vld [vmem:[#allocation6 + $0x2c] sm:$0xf]
    %v377 = vld [vmem:[#allocation6 + $0x30] sm:$0xf]
    %v378 = vld [vmem:[#allocation6 + $0x34] sm:$0xf]
    %v379 = vld [vmem:[#allocation6 + $0x38] sm:$0xf]
    %v380 = vld [vmem:[#allocation6 + $0x3c] sm:$0xf]
    %v381 = vld [vmem:[%s6] sm:$0x1]
    %v383 = vlaneseq
    %v384 = vshrl.u32 %v383, 7
    %v385 = vsub.s32 0, %v384
    %v386 = vrot.slane %v381, %v385
    %v404 = vunpack.c.l.b16 %v365
    %v405 = vunpack.c.l.b16 %v366
    %v406 = vunpack.c.l.b16 %v367
    %v407 = vunpack.c.l.b16 %v368
    %v408 = vunpack.c.l.b16 %v369
    %v409 = vunpack.c.l.b16 %v370
    %v410 = vunpack.c.l.b16 %v371
    %v411 = vunpack.c.l.b16 %v372
    %v412 = vunpack.c.l.b16 %v373
    %v413 = vunpack.c.l.b16 %v374
    %v414 = vunpack.c.l.b16 %v375
    %v415 = vunpack.c.l.b16 %v376
    %v416 = vunpack.c.l.b16 %v377
    %v417 = vunpack.c.l.b16 %v378
    %v418 = vunpack.c.l.b16 %v379
    %v419 = vunpack.c.l.b16 %v380
    %v420 = vpack.c.b16 %v405, %v404
    %v421 = vpack.c.b16 %v407, %v406
    %v422 = vpack.c.b16 %v409, %v408
    %v423 = vpack.c.b16 %v411, %v410
    %v424 = vpack.c.b16 %v413, %v412
    %v425 = vpack.c.b16 %v415, %v414
    %v426 = vpack.c.b16 %v417, %v416
    %v427 = vpack.c.b16 %v419, %v418
    %436 = vmatprep.subr.bf16.mxu0 0
    %437 = vmatpush1.bf16.msra.mxu0 %v420
    %438 = vmatprep.subr.bf16.mxu0 0
    %439 = vmatpush1.bf16.msra.mxu0 %v421
    %440 = vmatprep.subr.bf16.mxu0 0
    %441 = vmatpush1.bf16.msra.mxu0 %v422
    %442 = vmatprep.subr.bf16.mxu0 0
    %443 = vmatpush1.bf16.msra.mxu0 %v423
    %444 = vmatprep.subr.bf16.mxu0 0
    %445 = vmatpush1.bf16.msra.mxu0 %v424
    %446 = vmatprep.subr.bf16.mxu0 0
    %447 = vmatpush1.bf16.msra.mxu0 %v425
    %448 = vmatprep.subr.bf16.mxu0 0
    %449 = vmatpush1.bf16.msra.mxu0 %v426
    %450 = vmatprep.subr.bf16.mxu0 0
    %451 = vmatpush1.bf16.msra.mxu0 %v427
    %452 = vmatprep.subr.bf16.mxu0 0
    %453 = vmatpush1.bf16.msra.mxu0 0
    %454 = vmatprep.subr.bf16.mxu0 0
    %455 = vmatpush1.bf16.msra.mxu0 0
    %456 = vmatprep.subr.bf16.mxu0 0
    %457 = vmatpush1.bf16.msra.mxu0 0
    %458 = vmatprep.subr.bf16.mxu0 0
    %459 = vmatpush1.bf16.msra.mxu0 0
    %460 = vmatprep.subr.bf16.mxu0 0
    %461 = vmatpush1.bf16.msra.mxu0 0
    %462 = vmatprep.subr.bf16.mxu0 0
    %463 = vmatpush1.bf16.msra.mxu0 0
    %464 = vmatprep.subr.bf16.mxu0 0
    %465 = vmatpush1.bf16.msra.mxu0 0
    %466 = vmatprep.subr.bf16.mxu0 0
    %467 = vmatpush1.bf16.msra.mxu0 0
    %468 = vmatprep.mubr.bf16.mxu0 0
    %469 = vmatmul.mubr.bf16.gmra.mrb[0].mxu0 %v364
    %v470 = vpop.f32.mrb[0].mxu0
    %v471 = vadd.f32 %v386, %v470
    %v472 = vpop.f32.mrb[0].mxu0
    %v473 = vpop.f32.mrb[0].mxu0
    %v474 = vadd.f32 %v386, %v473
    %v475 = vpop.f32.mrb[0].mxu0
    %476 = vdwg.mxu0
    %v477 = vmax.f32 %v471, 0.0
    %v478 = vmax.f32 %v474, 0.0
    %v479 = vpack.c.bf16 %v478, %v477
    %v480 = vld [vmem:[#allocation7] sm:$0xf]
    %v481 = vld [vmem:[#allocation7 + $0x4] sm:$0xf]
    %v482 = vld [vmem:[#allocation7 + $0x8] sm:$0xf]
    %v483 = vld [vmem:[#allocation7 + $0xc] sm:$0xf]
    %v484 = vld [vmem:[#allocation7 + $0x10] sm:$0xf]
    %v485 = vld [vmem:[#allocation7 + $0x14] sm:$0xf]
    %v486 = vld [vmem:[#allocation7 + $0x18] sm:$0xf]
    %v487 = vld [vmem:[#allocation7 + $0x1c] sm:$0xf]
    %v488 = vld [vmem:[#allocation7 + $0x20] sm:$0xf]
    %v489 = vld [vmem:[#allocation7 + $0x24] sm:$0xf]
    %v490 = vld [vmem:[#allocation7 + $0x28] sm:$0xf]
    %v491 = vld [vmem:[#allocation7 + $0x2c] sm:$0xf]
    %v492 = vld [vmem:[#allocation7 + $0x30] sm:$0xf]
    %v493 = vld [vmem:[#allocation7 + $0x34] sm:$0xf]
    %v494 = vld [vmem:[#allocation7 + $0x38] sm:$0xf]
    %v495 = vld [vmem:[#allocation7 + $0x3c] sm:$0xf]
    %v496 = vld [vmem:[%s8] sm:$0x1]
    %v498 = vlaneseq
    %v499 = vshrl.u32 %v498, 7
    %v500 = vsub.s32 0, %v499
    %v501 = vrot.slane %v496, %v500
    %v519 = vunpack.c.l.b16 %v480
    %v520 = vunpack.c.l.b16 %v481
    %v521 = vunpack.c.l.b16 %v482
    %v522 = vunpack.c.l.b16 %v483
    %v523 = vunpack.c.l.b16 %v484
    %v524 = vunpack.c.l.b16 %v485
    %v525 = vunpack.c.l.b16 %v486
    %v526 = vunpack.c.l.b16 %v487
    %v527 = vunpack.c.l.b16 %v488
    %v528 = vunpack.c.l.b16 %v489
    %v529 = vunpack.c.l.b16 %v490
    %v530 = vunpack.c.l.b16 %v491
    %v531 = vunpack.c.l.b16 %v492
    %v532 = vunpack.c.l.b16 %v493
    %v533 = vunpack.c.l.b16 %v494
    %v534 = vunpack.c.l.b16 %v495
    %v535 = vpack.c.b16 %v520, %v519
    %v536 = vpack.c.b16 %v522, %v521
    %v537 = vpack.c.b16 %v524, %v523
    %v538 = vpack.c.b16 %v526, %v525
    %v539 = vpack.c.b16 %v528, %v527
    %v540 = vpack.c.b16 %v530, %v529
    %v541 = vpack.c.b16 %v532, %v531
    %v542 = vpack.c.b16 %v534, %v533
    %551 = vmatprep.subr.bf16.mxu0 0
    %552 = vmatpush1.bf16.msra.mxu0 %v535
    %553 = vmatprep.subr.bf16.mxu0 0
    %554 = vmatpush1.bf16.msra.mxu0 %v536
    %555 = vmatprep.subr.bf16.mxu0 0
    %556 = vmatpush1.bf16.msra.mxu0 %v537
    %557 = vmatprep.subr.bf16.mxu0 0
    %558 = vmatpush1.bf16.msra.mxu0 %v538
    %559 = vmatprep.subr.bf16.mxu0 0
    %560 = vmatpush1.bf16.msra.mxu0 %v539
    %561 = vmatprep.subr.bf16.mxu0 0
    %562 = vmatpush1.bf16.msra.mxu0 %v540
    %563 = vmatprep.subr.bf16.mxu0 0
    %564 = vmatpush1.bf16.msra.mxu0 %v541
    %565 = vmatprep.subr.bf16.mxu0 0
    %566 = vmatpush1.bf16.msra.mxu0 %v542
    %567 = vmatprep.subr.bf16.mxu0 0
    %568 = vmatpush1.bf16.msra.mxu0 0
    %569 = vmatprep.subr.bf16.mxu0 0
    %570 = vmatpush1.bf16.msra.mxu0 0
    %571 = vmatprep.subr.bf16.mxu0 0
    %572 = vmatpush1.bf16.msra.mxu0 0
    %573 = vmatprep.subr.bf16.mxu0 0
    %574 = vmatpush1.bf16.msra.mxu0 0
    %575 = vmatprep.subr.bf16.mxu0 0
    %576 = vmatpush1.bf16.msra.mxu0 0
    %577 = vmatprep.subr.bf16.mxu0 0
    %578 = vmatpush1.bf16.msra.mxu0 0
    %579 = vmatprep.subr.bf16.mxu0 0
    %580 = vmatpush1.bf16.msra.mxu0 0
    %581 = vmatprep.subr.bf16.mxu0 0
    %582 = vmatpush1.bf16.msra.mxu0 0
    %583 = vmatprep.mubr.bf16.mxu0 0
    %584 = vmatmul.mubr.bf16.gmra.mrb[0].mxu0 %v479
    %v585 = vpop.f32.mrb[0].mxu0
    %v586 = vadd.f32 %v501, %v585
    %v587 = vpop.f32.mrb[0].mxu0
    %v588 = vpop.f32.mrb[0].mxu0
    %v589 = vadd.f32 %v501, %v588
    %v590 = vpop.f32.mrb[0].mxu0
    %591 = vdwg.mxu0
    %v592 = vmax.f32 %v586, 0.0
    %v593 = vmax.f32 %v589, 0.0
    %v594 = vpack.c.bf16 %v593, %v592
    %v595 = vld [vmem:[#allocation9] sm:$0xf]
    %v596 = vld [vmem:[#allocation9 + $0x4] sm:$0xf]
    %v597 = vld [vmem:[#allocation9 + $0x8] sm:$0xf]
    %v598 = vld [vmem:[#allocation9 + $0xc] sm:$0xf]
    %v599 = vld [vmem:[#allocation9 + $0x10] sm:$0xf]
    %v600 = vld [vmem:[#allocation9 + $0x14] sm:$0xf]
    %v601 = vld [vmem:[#allocation9 + $0x18] sm:$0xf]
    %v602 = vld [vmem:[#allocation9 + $0x1c] sm:$0xf]
    %v603 = vld [vmem:[#allocation9 + $0x20] sm:$0xf]
    %v604 = vld [vmem:[#allocation9 + $0x24] sm:$0xf]
    %v605 = vld [vmem:[#allocation9 + $0x28] sm:$0xf]
    %v606 = vld [vmem:[#allocation9 + $0x2c] sm:$0xf]
    %v607 = vld [vmem:[#allocation9 + $0x30] sm:$0xf]
    %v608 = vld [vmem:[#allocation9 + $0x34] sm:$0xf]
    %v609 = vld [vmem:[#allocation9 + $0x38] sm:$0xf]
    %v610 = vld [vmem:[#allocation9 + $0x3c] sm:$0xf]
    %v611 = vld [vmem:[%s10] sm:$0x1]
    %v613 = vlaneseq
    %v614 = vshrl.u32 %v613, 7
    %v615 = vsub.s32 0, %v614
    %v616 = vrot.slane %v611, %v615
    %v634 = vunpack.c.l.b16 %v595
    %v635 = vunpack.c.l.b16 %v596
    %v636 = vunpack.c.l.b16 %v597
    %v637 = vunpack.c.l.b16 %v598
    %v638 = vunpack.c.l.b16 %v599
    %v639 = vunpack.c.l.b16 %v600
    %v640 = vunpack.c.l.b16 %v601
    %v641 = vunpack.c.l.b16 %v602
    %v642 = vunpack.c.l.b16 %v603
    %v643 = vunpack.c.l.b16 %v604
    %v644 = vunpack.c.l.b16 %v605
    %v645 = vunpack.c.l.b16 %v606
    %v646 = vunpack.c.l.b16 %v607
    %v647 = vunpack.c.l.b16 %v608
    %v648 = vunpack.c.l.b16 %v609
    %v649 = vunpack.c.l.b16 %v610
    %v650 = vpack.c.b16 %v635, %v634
    %v651 = vpack.c.b16 %v637, %v636
    %v652 = vpack.c.b16 %v639, %v638
    %v653 = vpack.c.b16 %v641, %v640
    %v654 = vpack.c.b16 %v643, %v642
    %v655 = vpack.c.b16 %v645, %v644
    %v656 = vpack.c.b16 %v647, %v646
    %v657 = vpack.c.b16 %v649, %v648
    %666 = vmatprep.subr.bf16.mxu0 0
    %667 = vmatpush1.bf16.msra.mxu0 %v650
    %668 = vmatprep.subr.bf16.mxu0 0
    %669 = vmatpush1.bf16.msra.mxu0 %v651
    %670 = vmatprep.subr.bf16.mxu0 0
    %671 = vmatpush1.bf16.msra.mxu0 %v652
    %672 = vmatprep.subr.bf16.mxu0 0
    %673 = vmatpush1.bf16.msra.mxu0 %v653
    %674 = vmatprep.subr.bf16.mxu0 0
    %675 = vmatpush1.bf16.msra.mxu0 %v654
    %676 = vmatprep.subr.bf16.mxu0 0
    %677 = vmatpush1.bf16.msra.mxu0 %v655
    %678 = vmatprep.subr.bf16.mxu0 0
    %679 = vmatpush1.bf16.msra.mxu0 %v656
    %680 = vmatprep.subr.bf16.mxu0 0
    %681 = vmatpush1.bf16.msra.mxu0 %v657
    %682 = vmatprep.subr.bf16.mxu0 0
    %683 = vmatpush1.bf16.msra.mxu0 0
    %684 = vmatprep.subr.bf16.mxu0 0
    %685 = vmatpush1.bf16.msra.mxu0 0
    %686 = vmatprep.subr.bf16.mxu0 0
    %687 = vmatpush1.bf16.msra.mxu0 0
    %688 = vmatprep.subr.bf16.mxu0 0
    %689 = vmatpush1.bf16.msra.mxu0 0
    %690 = vmatprep.subr.bf16.mxu0 0
    %691 = vmatpush1.bf16.msra.mxu0 0
    %692 = vmatprep.subr.bf16.mxu0 0
    %693 = vmatpush1.bf16.msra.mxu0 0
    %694 = vmatprep.subr.bf16.mxu0 0
    %695 = vmatpush1.bf16.msra.mxu0 0
    %696 = vmatprep.subr.bf16.mxu0 0
    %697 = vmatpush1.bf16.msra.mxu0 0
    %698 = vmatprep.mubr.bf16.mxu0 0
    %699 = vmatmul.mubr.bf16.gmra.mrb[0].mxu0 %v594
    %v700 = vpop.f32.mrb[0].mxu0
    %v701 = vadd.f32 %v616, %v700
    %v702 = vpop.f32.mrb[0].mxu0
    %v703 = vpop.f32.mrb[0].mxu0
    %v704 = vadd.f32 %v616, %v703
    %v705 = vpop.f32.mrb[0].mxu0
    %706 = vdwg.mxu0
    %v707 = vmax.f32 %v701, 0.0
    %v708 = vmax.f32 %v704, 0.0
    %v709 = vpack.c.bf16 %v708, %v707
    %v710 = vld [vmem:[#allocation10] sm:$0xf]
    %v711 = vld [vmem:[#allocation10 + $0x4] sm:$0xf]
    %v712 = vld [vmem:[#allocation10 + $0x8] sm:$0xf]
    %v713 = vld [vmem:[#allocation10 + $0xc] sm:$0xf]
    %v714 = vld [vmem:[#allocation10 + $0x10] sm:$0xf]
    %v715 = vld [vmem:[#allocation10 + $0x14] sm:$0xf]
    %v716 = vld [vmem:[#allocation10 + $0x18] sm:$0xf]
    %v717 = vld [vmem:[#allocation10 + $0x1c] sm:$0xf]
    %v718 = vld [vmem:[#allocation10 + $0x20] sm:$0xf]
    %v719 = vld [vmem:[#allocation10 + $0x24] sm:$0xf]
    %v720 = vld [vmem:[#allocation10 + $0x28] sm:$0xf]
    %v721 = vld [vmem:[#allocation10 + $0x2c] sm:$0xf]
    %v722 = vld [vmem:[#allocation10 + $0x30] sm:$0xf]
    %v723 = vld [vmem:[#allocation10 + $0x34] sm:$0xf]
    %v724 = vld [vmem:[#allocation10 + $0x38] sm:$0xf]
    %v725 = vld [vmem:[#allocation10 + $0x3c] sm:$0xf]
    %v726 = vld [vmem:[%s12] sm:$0x1]
    %v728 = vlaneseq
    %v729 = vshrl.u32 %v728, 7
    %v730 = vsub.s32 0, %v729
    %v731 = vrot.slane %v726, %v730
    %v749 = vunpack.c.l.b16 %v710
    %v750 = vunpack.c.l.b16 %v711
    %v751 = vunpack.c.l.b16 %v712
    %v752 = vunpack.c.l.b16 %v713
    %v753 = vunpack.c.l.b16 %v714
    %v754 = vunpack.c.l.b16 %v715
    %v755 = vunpack.c.l.b16 %v716
    %v756 = vunpack.c.l.b16 %v717
    %v757 = vunpack.c.l.b16 %v718
    %v758 = vunpack.c.l.b16 %v719
    %v759 = vunpack.c.l.b16 %v720
    %v760 = vunpack.c.l.b16 %v721
    %v761 = vunpack.c.l.b16 %v722
    %v762 = vunpack.c.l.b16 %v723
    %v763 = vunpack.c.l.b16 %v724
    %v764 = vunpack.c.l.b16 %v725
    %v765 = vpack.c.b16 %v750, %v749
    %v766 = vpack.c.b16 %v752, %v751
    %v767 = vpack.c.b16 %v754, %v753
    %v768 = vpack.c.b16 %v756, %v755
    %v769 = vpack.c.b16 %v758, %v757
    %v770 = vpack.c.b16 %v760, %v759
    %v771 = vpack.c.b16 %v762, %v761
    %v772 = vpack.c.b16 %v764, %v763
    %781 = vmatprep.subr.bf16.mxu0 0
    %782 = vmatpush1.bf16.msra.mxu0 %v765
    %783 = vmatprep.subr.bf16.mxu0 0
    %784 = vmatpush1.bf16.msra.mxu0 %v766
    %785 = vmatprep.subr.bf16.mxu0 0
    %786 = vmatpush1.bf16.msra.mxu0 %v767
    %787 = vmatprep.subr.bf16.mxu0 0
    %788 = vmatpush1.bf16.msra.mxu0 %v768
    %789 = vmatprep.subr.bf16.mxu0 0
    %790 = vmatpush1.bf16.msra.mxu0 %v769
    %791 = vmatprep.subr.bf16.mxu0 0
    %792 = vmatpush1.bf16.msra.mxu0 %v770
    %793 = vmatprep.subr.bf16.mxu0 0
    %794 = vmatpush1.bf16.msra.mxu0 %v771
    %795 = vmatprep.subr.bf16.mxu0 0
    %796 = vmatpush1.bf16.msra.mxu0 %v772
    %797 = vmatprep.subr.bf16.mxu0 0
    %798 = vmatpush1.bf16.msra.mxu0 0
    %799 = vmatprep.subr.bf16.mxu0 0
    %800 = vmatpush1.bf16.msra.mxu0 0
    %801 = vmatprep.subr.bf16.mxu0 0
    %802 = vmatpush1.bf16.msra.mxu0 0
    %803 = vmatprep.subr.bf16.mxu0 0
    %804 = vmatpush1.bf16.msra.mxu0 0
    %805 = vmatprep.subr.bf16.mxu0 0
    %806 = vmatpush1.bf16.msra.mxu0 0
    %807 = vmatprep.subr.bf16.mxu0 0
    %808 = vmatpush1.bf16.msra.mxu0 0
    %809 = vmatprep.subr.bf16.mxu0 0
    %810 = vmatpush1.bf16.msra.mxu0 0
    %811 = vmatprep.subr.bf16.mxu0 0
    %812 = vmatpush1.bf16.msra.mxu0 0
    %813 = vmatprep.mubr.bf16.mxu0 0
    %814 = vmatmul.mubr.bf16.gmra.mrb[0].mxu0 %v709
    %v815 = vpop.f32.mrb[0].mxu0
    %v816 = vadd.f32 %v731, %v815
    %v817 = vpop.f32.mrb[0].mxu0
    %v818 = vpop.f32.mrb[0].mxu0
    %v819 = vadd.f32 %v731, %v818
    %v820 = vpop.f32.mrb[0].mxu0
    %821 = vdwg.mxu0
    %822 = vst [vmem:[%s13] sm:$0xff] %v816
    %823 = vst [vmem:[%s13 + $0x8] sm:$0xff] %v819
    // Predicated region
    $region78: #{_mlp_forward_impl.1} parent=1 // pred_check
      _
    $region79: #{_mlp_forward_impl.1} parent=1 // pred_check_branch
      %825 = sbr.rel (0) target = $region81
    $region80: #{_mlp_forward_impl.1} parent=1 // pred_region
      _
    $region81: #{_mlp_forward_impl.1} parent=1 // pred_fallthru
      _
    // Predicated region
    $region82: #{_mlp_forward_impl.1} parent=1 // pred_check
      _
    $region83: #{_mlp_forward_impl.1} parent=1 // pred_check_branch
      %827 = sbr.rel (0) target = $region85
    $region84: #{_mlp_forward_impl.1} parent=1 // pred_region
      _
    $region85: #{_mlp_forward_impl.1} parent=1 // pred_fallthru
      _
    %828 = vsyncpa [#allocation3], 1
    %829 = vsyncpa [#allocation5], 1
    %830 = vsyncpa [#allocation8], 1
    %831 = vsyncpa [#allocation11], 1

</llo_original>
